<compile_context>
chip_gen: v5e
topology: v5e:2x2
jax: 0.10.0
libtpu: 0.0.40
codegen_flags: <defaults>
</compile_context>

<pallas_src>
import functools
import jax
import jax.numpy as jnp
from jax.experimental import pallas as pl
from jax.experimental.pallas import tpu as pltpu

HIDDEN_DIM = 32          # cmd_args.hidden_dim
EMBED_DIM = 16           # cmd_args.embedding_dim
NUM_EMB = 64             # embedding vocabulary size (synthetic)
GLOBAL_NODE = False      # cmd_args.global_node -> global layer is built
TILE_M = 256             # row tile for fused dense kernels (multiple of 8)
# MXU input dtype.  Set to jnp.bfloat16 on v6e/v7x when the dense path becomes
# MXU-bound (accumulation stays f32 via preferred_element_type); kept f32 here
# to match the PyTorch reference numerics.
MXU_DTYPE = jnp.float32
# TODO(synk): F.dropout uses training-mode randomness in PyTorch; implemented as
# eval-mode identity for determinism.

_PARAMS = pltpu.CompilerParams(dimension_semantics=("parallel",))


# ------------------------------ small helpers -------------------------------

def _round_up(x, m):
    return (x + m - 1) // m * m


def _mxu_dot(a, b):
    return jnp.dot(a.astype(MXU_DTYPE), b.astype(MXU_DTYPE),
                   preferred_element_type=jnp.float32)


def _apply_act(y, act):
    if act == "relu":
        return jnp.maximum(y, 0.0)
    if act == "tanh":
        return jnp.tanh(y)
    if act == "log_softmax":
        m = jnp.max(y, axis=-1, keepdims=True)
        z = y - m
        return z - jnp.log(jnp.sum(jnp.exp(z), axis=-1, keepdims=True))
    return y


def _row_plan(m):
    bm = min(TILE_M, _round_up(m, 8))
    return bm, _round_up(m, bm)


def _pad_rows(a, mp):
    m = a.shape[0]
    return a if m == mp else jnp.pad(a, ((0, mp - m), (0, 0)))


def _row_call(kernel, row_args, full_args, n_out, m):
    """Run `kernel(*row_refs, *full_refs, o_ref)` tiled over rows.

    row_args : [M, K_i] arrays, tiled along the row axis (padded to a multiple
               of the row tile; pad rows are sliced off the output).
    full_args: 2-D broadcast operands (weights, (1, N) biases) resident per
               grid step.  Output is [M, n_out] float32.
    """
    bm, mp = _row_plan(m)
    grid = (mp // bm,)
    row_args = [_pad_rows(a.astype(jnp.float32), mp) for a in row_args]
    full_args = [a.astype(jnp.float32) for a in full_args]
    in_specs = [pl.BlockSpec((bm, a.shape[1]), lambda i: (i, 0)) for a in row_args]
    in_specs += [pl.BlockSpec(a.shape, lambda i: (0, 0)) for a in full_args]
    out = pl.pallas_call(
        kernel,
        out_shape=jax.ShapeDtypeStruct((mp, n_out), jnp.float32),
        grid=grid,
        in_specs=in_specs,
        out_specs=pl.BlockSpec((bm, n_out), lambda i: (i, 0)),
        compiler_params=_PARAMS,
    )(*row_args, *full_args)
    return out[:m]


# ----------------------------- Pallas kernels ------------------------------

def _matmul_kernel(x_ref, w_ref, o_ref):
    # No bias operand at all (avoids DMAing a zeros bias).
    o_ref[...] = _mxu_dot(x_ref[...], w_ref[...])


def _dense_bias_act_kernel(x_ref, w_ref, b_ref, o_ref, *, act):
    y = _mxu_dot(x_ref[...], w_ref[...]) + b_ref[...]
    o_ref[...] = _apply_act(y, act)


def _arma_step_kernel(agg_ref, root_ref, b_ref, w_ref, o_ref):
    # ARMA combine (relu(agg + x0@W_root + b)) fused with the next iteration's
    # `out @ W_{t+1}` matmul.
    h = jnp.maximum(agg_ref[...] + root_ref[...] + b_ref[...], 0.0)
    o_ref[...] = _mxu_dot(h, w_ref[...])


def _local_head_kernel(agg_ref, root_ref, b0_ref,
                       w1_ref, b1_ref, w2_ref, b2_ref, w3_ref, b3_ref, o_ref):
    # Final ARMA combine (+ the outer F.relu, idempotent on a relu'd value)
    # fused with the 3-layer local MLP head; intermediates stay in vregs.
    h = jnp.maximum(agg_ref[...] + root_ref[...] + b0_ref[...], 0.0)
    h = jnp.maximum(_mxu_dot(h, w1_ref[...]) + b1_ref[...], 0.0)
    h = jnp.maximum(_mxu_dot(h, w2_ref[...]) + b2_ref[...], 0.0)   # dropout = id
    o_ref[...] = jnp.tanh(_mxu_dot(h, w3_ref[...]) + b3_ref[...])


def _global_head_kernel(p1_ref, p2_ref, p3_ref, p4_ref,
                        w1_ref, b1_ref, w2_ref, b2_ref, w3_ref, b3_ref, o_ref):
    # Sum of the 4 pooled readouts fused with the 3-layer global MLP head
    # and the final log-softmax.
    x = p1_ref[...] + p2_ref[...] + p3_ref[...] + p4_ref[...]
    h = jnp.maximum(_mxu_dot(x, w1_ref[...]) + b1_ref[...], 0.0)   # dropout = id
    h = jnp.maximum(_mxu_dot(h, w2_ref[...]) + b2_ref[...], 0.0)
    y = _mxu_dot(h, w3_ref[...]) + b3_ref[...]
    o_ref[...] = _apply_act(y, "log_softmax")


# ----------------------------- kernel wrappers ------------------------------

def arma_precompute(x0, w_cat):
    """[N, H] @ [H, 5H] -> lane-dense [N, 5H] (W_init and 4 root weights)."""
    return _row_call(_matmul_kernel, [x0], [w_cat], w_cat.shape[1], x0.shape[0])


def gconv_combine(agg, x, w_rel, b_rel, w_root):
    """relu(concat([agg, x]) @ vstack([W_rel, W_root]) + b_rel) — one matmul."""
    cat = jnp.concatenate([agg, x], axis=1)                  # concat in wrapper
    w = jnp.concatenate([w_rel, w_root], axis=0)             # [2H, H]
    return _row_call(functools.partial(_dense_bias_act_kernel, act="relu"),
                     [cat], [w, b_rel.reshape(1, -1)], w.shape[1], cat.shape[0])


def arma_step(agg, root, bias, w_next):
    return _row_call(_arma_step_kernel, [agg, root],
                     [bias.reshape(1, -1), w_next], w_next.shape[1], agg.shape[0])


def local_head(agg, root, bias, w1, b1, w2, b2, w3, b3):
    full = [bias.reshape(1, -1), w1, b1.reshape(1, -1),
            w2, b2.reshape(1, -1), w3, b3.reshape(1, -1)]
    return _row_call(_local_head_kernel, [agg, root], full,
                     w3.shape[1], agg.shape[0])


def global_head(pooled, w1, b1, w2, b2, w3, b3):
    full = [w1, b1.reshape(1, -1), w2, b2.reshape(1, -1), w3, b3.reshape(1, -1)]
    return _row_call(_global_head_kernel, list(pooled), full,
                     w3.shape[1], pooled[0].shape[0])


# ------------------------------ JAX glue ops --------------------------------

def graph_conv_e(x, edge_index, edge_w, edge_mask, p):
    """GraphConvE: elementwise edge-weighted message passing + fused combine."""
    # TODO(synk): the gather + scatter-add stays in XLA; a scalar-prefetch
    # Pallas aggregation kernel (edges sorted by dst, per-block offsets in SMEM,
    # manual double-buffered edge-slab DMA) is the next step for large graphs.
    src, dst = edge_index[0], edge_index[1]
    msg = x[src] * edge_w * edge_mask[:, None].astype(jnp.float32)
    agg = jax.ops.segment_sum(msg, dst, num_segments=x.shape[0])
    return gconv_combine(agg, x, p["w_rel"], p["b_rel"], p["w_root"])


def sag_pool(x, edge_index, batch, node_mask, edge_mask, p, num_graphs, ratio=0.5):
    """SAGPooling(hidden_dim) with static shapes + validity masks."""
    N = x.shape[0]
    src, dst = edge_index[0], edge_index[1]
    # scoring GNN = GraphConv(H, 1), called without edge weights; score = tanh(.)
    # Kept in plain JAX: its output is a single lane (1-wide), not worth a
    # pallas_call with a masked 1/128-lane store.
    msg = x[src] * edge_mask[:, None].astype(jnp.float32)
    agg = jax.ops.segment_sum(msg, dst, num_segments=N)
    score = jnp.tanh(agg @ p["w_rel"] + p["b_rel"] + x @ p["w_root"])[:, 0]   # [N]
    # top-k per graph: k = ceil(ratio * n_valid)
    n_per = jax.ops.segment_sum(node_mask.astype(jnp.int32), batch,
                                num_segments=num_graphs)
    k_per = jnp.ceil(ratio * n_per.astype(jnp.float32)).astype(jnp.int32)
    idx = jnp.arange(N)
    s = jnp.where(node_mask, score, -jnp.inf)
    same = batch[:, None] == batch[None, :]
    better = (s[None, :] > s[:, None]) | ((s[None, :] == s[:, None]) &
                                          (idx[None, :] < idx[:, None]))
    rank = jnp.sum(same & better & node_mask[None, :], axis=1)
    keep = node_mask & (rank < k_per[batch])
    x_new = jnp.where(keep[:, None], x * score[:, None], 0.0)        # x[perm]*score[perm]
    edge_mask_new = edge_mask & keep[src] & keep[dst]                 # filter_adj
    return x_new, edge_mask_new, keep


def global_pools(x, batch, node_mask, num_graphs):
    """[gmp(x,batch), gap(x,batch)] -> [B, 2H] with masked nodes excluded."""
    neg = jnp.float32(-1e30)
    gmax = jax.ops.segment_max(jnp.where(node_mask[:, None], x, neg), batch,
                               num_segments=num_graphs)
    gsum = jax.ops.segment_sum(jnp.where(node_mask[:, None], x, 0.0), batch,
                               num_segments=num_graphs)
    cnt = jax.ops.segment_sum(node_mask.astype(jnp.float32), batch,
                              num_segments=num_graphs)
    gmean = gsum / jnp.maximum(cnt, 1.0)[:, None]
    return jnp.concatenate([gmax, gmean], axis=1)


# ------------------------------ sub-modules ---------------------------------

def gnn_local_forward(p, x_ids, edge_index, edge_attr_ids, batch):
    H = HIDDEN_DIM
    x0 = p["embedding"][x_ids]                                        # [N, H]
    edge_info = edge_attr_ids.astype(jnp.float32) / jnp.max(edge_attr_ids).astype(jnp.float32)
    N = x0.shape[0]
    src, dst = edge_index[0], edge_index[1]
    # gcn_norm (add_self_loops=False)
    deg = jax.ops.segment_sum(edge_info, dst, num_segments=N)
    dis = jnp.where(deg > 0, 1.0 / jnp.sqrt(deg), 0.0)
    norm = dis[src] * edge_info * dis[dst]

    # ARMAConv(H, H, num_layers=4), num_stacks=1, shared_weights=False.
    # Hoist the loop-invariant terms: one lane-dense [N, 5H] matmul computes
    # x0 @ W_init and all four x0 @ W_root_t slabs.
    w_cat = jnp.concatenate([p["arma_init_w"]] +
                            [p["arma_root_w"][t] for t in range(4)], axis=1)
    pre = arma_precompute(x0, w_cat)                                  # [N, 5H]
    out_lin = pre[:, :H]                                              # x0 @ W_init
    roots = pre[:, H:]                                                # [N, 4H]

    for t in range(4):
        # TODO(synk): propagate (gather + scatter-add) left to XLA segment_sum.
        agg = jax.ops.segment_sum(out_lin[src] * norm[:, None], dst,
                                  num_segments=N)
        root_t = roots[:, t * H:(t + 1) * H]
        if t < 3:
            # fused: relu(agg + x0@W_root_t + b_t) @ W_{t+1}
            out_lin = arma_step(agg, root_t, p["arma_bias"][t], p["arma_w"][t])
        else:
            # fused: final ARMA combine + F.relu + lin1/lin2/lin3 head
            return local_head(agg, root_t, p["arma_bias"][t],
                              p["local_lin1_w"], p["local_lin1_b"],
                              p["local_lin2_w"], p["local_lin2_b"],
                              p["local_lin3_w"], p["local_lin3_b"])


def gnn_global_forward(p, x_ids, edge_index, edge_attr_ids, batch, num_graphs):
    x = p["embedding"][x_ids]                                         # [N, H]
    ew = p["embedding"][edge_attr_ids]                                # [E, H]
    N, E = x.shape[0], edge_index.shape[1]
    node_mask = jnp.ones((N,), bool)
    edge_mask = jnp.ones((E,), bool)
    pooled = []
    for t in range(1, 5):
        x = graph_conv_e(x, edge_index, ew, edge_mask, p[f"gconv{t}"])
        x, edge_mask, node_mask = sag_pool(x, edge_index, batch, node_mask,
                                           edge_mask, p[f"gpool{t}"], num_graphs)
        pooled.append(global_pools(x, batch, node_mask, num_graphs))
    # (x1+x2+x3+x4) + lin1/lin2/lin3 + log_softmax in one fused kernel
    return global_head(pooled,
                       p["glob_lin1_w"], p["glob_lin1_b"],
                       p["glob_lin2_w"], p["glob_lin2_b"],
                       p["glob_lin3_w"], p["glob_lin3_b"])


def gnngl_forward(p, x_ids, edge_index, edge_attr_ids, batch, num_graphs):
    local_embedding = gnn_local_forward(p, x_ids, edge_index, edge_attr_ids, batch)
    global_embedding = None
    if not GLOBAL_NODE:
        global_embedding = gnn_global_forward(p, x_ids, edge_index, edge_attr_ids,
                                              batch, num_graphs)
    return local_embedding, global_embedding


# ------------------------------ parameters ----------------------------------

def init_params(key):
    H = HIDDEN_DIM
    keys = iter(jax.random.split(key, 64))

    def nrm(shape, scale=0.1):
        return jax.random.normal(next(keys), shape, jnp.float32) * scale

    p = {"embedding": nrm((NUM_EMB, H), 0.5)}
    # GNNLocal: ARMAConv + 3 linears
    p["arma_init_w"] = nrm((H, H))
    p["arma_w"] = nrm((3, H, H))
    p["arma_root_w"] = nrm((4, H, H))
    p["arma_bias"] = nrm((4, H))
    p["local_lin1_w"], p["local_lin1_b"] = nrm((H, H)), nrm((H,))
    p["local_lin2_w"], p["local_lin2_b"] = nrm((H, H // 2)), nrm((H // 2,))
    p["local_lin3_w"], p["local_lin3_b"] = nrm((H // 2, EMBED_DIM)), nrm((EMBED_DIM,))
    # GNNGlobal: 4x GraphConvE + 4x SAGPooling + 3 linears
    for t in range(1, 5):
        p[f"gconv{t}"] = {"w_rel": nrm((H, H)), "b_rel": nrm((H,)), "w_root": nrm((H, H))}
        p[f"gpool{t}"] = {"w_rel": nrm((H, 1)), "b_rel": nrm((1,)), "w_root": nrm((H, 1))}
    p["glob_lin1_w"], p["glob_lin1_b"] = nrm((2 * H, H)), nrm((H,))
    p["glob_lin2_w"], p["glob_lin2_b"] = nrm((H, H)), nrm((H,))
    p["glob_lin3_w"], p["glob_lin3_b"] = nrm((H, H)), nrm((H,))
    return p


# --------------------------------- main --------------------------------------

if __name__ == "__main__":
    key = jax.random.PRNGKey(0)
    pkey, dkey = jax.random.split(key)
    params = init_params(pkey)

    N, E, B = 16, 32, 2
    k1, k2, k3 = jax.random.split(dkey, 3)
    x_ids = jax.random.randint(k1, (N,), 0, NUM_EMB, dtype=jnp.int32)
    edge_attr_ids = jax.random.randint(k2, (E,), 1, NUM_EMB, dtype=jnp.int32)
    batch = jnp.concatenate([jnp.zeros(8, jnp.int32), jnp.ones(8, jnp.int32)])
    ks = jax.random.split(k3, 4)
    src0 = jax.random.randint(ks[0], (E // 2,), 0, 8, dtype=jnp.int32)
    dst0 = jax.random.randint(ks[1], (E // 2,), 0, 8, dtype=jnp.int32)
    src1 = jax.random.randint(ks[2], (E // 2,), 8, 16, dtype=jnp.int32)
    dst1 = jax.random.randint(ks[3], (E // 2,), 8, 16, dtype=jnp.int32)
    edge_index = jnp.stack([jnp.concatenate([src0, src1]),
                            jnp.concatenate([dst0, dst1])])

    forward = jax.jit(gnngl_forward, static_argnums=(5,))
    local_emb, global_emb = forward(params, x_ids, edge_index,
                                    edge_attr_ids, batch, B)
    jax.block_until_ready(local_emb)
    if global_emb is not None:
        jax.block_until_ready(global_emb)
    assert local_emb.shape == (N, EMBED_DIM)
    assert global_emb is None or global_emb.shape == (B, HIDDEN_DIM)
    print("KERNEL_OK")
</pallas_src>

<mosaic_0001>
module attributes {stable_mosaic.version = 11 : i64} {
  func.func @_dense_bias_act_kernel(%arg0: i32, %arg1: memref<16x64xf32, #tpu.memory_space<vmem>>, %arg2: memref<64x32xf32, #tpu.memory_space<vmem>>, %arg3: memref<1x32xf32, #tpu.memory_space<vmem>>, %arg4: memref<16x32xf32, #tpu.memory_space<vmem>>) attributes {dimension_semantics = [#tpu.dimension_semantics<parallel>], iteration_bounds = array<i64: 1>, scalar_prefetch = 0 : i64, scratch_operands = 0 : i64, tpu.core_type = #tpu.core_type<tc>, window_params = [{transform_indices = @transform_0, window_bounds = array<i64: 16, 64>}, {pipeline_mode = #tpu.pipeline_mode<synchronous>, transform_indices = @transform_1, window_bounds = array<i64: 64, 32>}, {pipeline_mode = #tpu.pipeline_mode<synchronous>, transform_indices = @transform_2, window_bounds = array<i64: 1, 32>}, {transform_indices = @transform_3, window_bounds = array<i64: 16, 32>}]} {
    %c0 = arith.constant 0 : index
    %c0_0 = arith.constant 0 : index
    %0 = vector.load %arg1[%c0, %c0_0] : memref<16x64xf32, #tpu.memory_space<vmem>>, vector<16x64xf32>
    %c0_1 = arith.constant 0 : index
    %c0_2 = arith.constant 0 : index
    %1 = vector.load %arg2[%c0_1, %c0_2] : memref<64x32xf32, #tpu.memory_space<vmem>>, vector<64x32xf32>
    %cst = arith.constant dense<0.000000e+00> : vector<16x32xf32>
    %2 = tpu.matmul %0, %1, %cst {dimension_numbers = #tpu.dot_dimension_numbers<[1], [0], [0], [1], [0, 0, 1, 1], [], []>} : vector<16x64xf32>, vector<64x32xf32>, vector<16x32xf32> -> vector<16x32xf32>
    %c0_3 = arith.constant 0 : index
    %c0_4 = arith.constant 0 : index
    %3 = vector.load %arg3[%c0_3, %c0_4] : memref<1x32xf32, #tpu.memory_space<vmem>>, vector<1x32xf32>
    %4 = vector.broadcast %3 : vector<1x32xf32> to vector<16x32xf32>
    %5 = arith.addf %2, %4 : vector<16x32xf32>
    %cst_5 = arith.constant 0.000000e+00 : f32
    %6 = vector.broadcast %cst_5 : f32 to vector<16x32xf32>
    %7 = arith.maximumf %5, %6 : vector<16x32xf32>
    %c0_6 = arith.constant 0 : index
    %c0_7 = arith.constant 0 : index
    %8 = vector.load %arg4[%c0_6, %c0_7] : memref<16x32xf32, #tpu.memory_space<vmem>>, vector<16x32xf32>
    tpu.vector_store %arg4[%c0_6, %c0_7], %7 {strides = array<i32>} : memref<16x32xf32, #tpu.memory_space<vmem>>, vector<16x32xf32>,
    return
  }
  func.func @transform_0(%arg0: i32) -> (i32, i32) {
    %c0_i32 = arith.constant 0 : i32
    %c0_i32_0 = arith.constant 0 : i32
    return %arg0, %c0_i32 : i32, i32
  }
  func.func @transform_1(%arg0: i32) -> (i32, i32) {
    %c0_i32 = arith.constant 0 : i32
    %c0_i32_0 = arith.constant 0 : i32
    %c0_i32_1 = arith.constant 0 : i32
    return %c0_i32, %c0_i32_0 : i32, i32
  }
  func.func @transform_2(%arg0: i32) -> (i32, i32) {
    %c0_i32 = arith.constant 0 : i32
    %c0_i32_0 = arith.constant 0 : i32
    %c0_i32_1 = arith.constant 0 : i32
    return %c0_i32, %c0_i32_0 : i32, i32
  }
  func.func @transform_3(%arg0: i32) -> (i32, i32) {
    %c0_i32 = arith.constant 0 : i32
    %c0_i32_0 = arith.constant 0 : i32
    return %arg0, %c0_i32 : i32, i32
  }
}

module attributes {stable_mosaic.version = 11 : i64} {
  func.func @_global_head_kernel(%arg0: i32, %arg1: memref<8x64xf32, #tpu.memory_space<vmem>>, %arg2: memref<8x64xf32, #tpu.memory_space<vmem>>, %arg3: memref<8x64xf32, #tpu.memory_space<vmem>>, %arg4: memref<8x64xf32, #tpu.memory_space<vmem>>, %arg5: memref<64x32xf32, #tpu.memory_space<vmem>>, %arg6: memref<1x32xf32, #tpu.memory_space<vmem>>, %arg7: memref<32x32xf32, #tpu.memory_space<vmem>>, %arg8: memref<1x32xf32, #tpu.memory_space<vmem>>, %arg9: memref<32x32xf32, #tpu.memory_space<vmem>>, %arg10: memref<1x32xf32, #tpu.memory_space<vmem>>, %arg11: memref<8x32xf32, #tpu.memory_space<vmem>>) attributes {dimension_semantics = [#tpu.dimension_semantics<parallel>], iteration_bounds = array<i64: 1>, scalar_prefetch = 0 : i64, scratch_operands = 0 : i64, tpu.core_type = #tpu.core_type<tc>, window_params = [{transform_indices = @transform_0, window_bounds = array<i64: 8, 64>}, {transform_indices = @transform_1, window_bounds = array<i64: 8, 64>}, {transform_indices = @transform_2, window_bounds = array<i64: 8, 64>}, {transform_indices = @transform_3, window_bounds = array<i64: 8, 64>}, {pipeline_mode = #tpu.pipeline_mode<synchronous>, transform_indices = @transform_4, window_bounds = array<i64: 64, 32>}, {pipeline_mode = #tpu.pipeline_mode<synchronous>, transform_indices = @transform_5, window_bounds = array<i64: 1, 32>}, {pipeline_mode = #tpu.pipeline_mode<synchronous>, transform_indices = @transform_6, window_bounds = array<i64: 32, 32>}, {pipeline_mode = #tpu.pipeline_mode<synchronous>, transform_indices = @transform_7, window_bounds = array<i64: 1, 32>}, {pipeline_mode = #tpu.pipeline_mode<synchronous>, transform_indices = @transform_8, window_bounds = array<i64: 32, 32>}, {pipeline_mode = #tpu.pipeline_mode<synchronous>, transform_indices = @transform_9, window_bounds = array<i64: 1, 32>}, {transform_indices = @transform_10, window_bounds = array<i64: 8, 32>}]} {
    %c0 = arith.constant 0 : index
    %c0_0 = arith.constant 0 : index
    %0 = vector.load %arg1[%c0, %c0_0] : memref<8x64xf32, #tpu.memory_space<vmem>>, vector<8x64xf32>
    %c0_1 = arith.constant 0 : index
    %c0_2 = arith.constant 0 : index
    %1 = vector.load %arg2[%c0_1, %c0_2] : memref<8x64xf32, #tpu.memory_space<vmem>>, vector<8x64xf32>
    %2 = arith.addf %0, %1 : vector<8x64xf32>
    %c0_3 = arith.constant 0 : index
    %c0_4 = arith.constant 0 : index
    %3 = vector.load %arg3[%c0_3, %c0_4] : memref<8x64xf32, #tpu.memory_space<vmem>>, vector<8x64xf32>
    %4 = arith.addf %2, %3 : vector<8x64xf32>
    %c0_5 = arith.constant 0 : index
    %c0_6 = arith.constant 0 : index
    %5 = vector.load %arg4[%c0_5, %c0_6] : memref<8x64xf32, #tpu.memory_space<vmem>>, vector<8x64xf32>
    %6 = arith.addf %4, %5 : vector<8x64xf32>
    %c0_7 = arith.constant 0 : index
    %c0_8 = arith.constant 0 : index
    %7 = vector.load %arg5[%c0_7, %c0_8] : memref<64x32xf32, #tpu.memory_space<vmem>>, vector<64x32xf32>
    %cst = arith.constant dense<0.000000e+00> : vector<8x32xf32>
    %8 = tpu.matmul %6, %7, %cst {dimension_numbers = #tpu.dot_dimension_numbers<[1], [0], [0], [1], [0, 0, 1, 1], [], []>} : vector<8x64xf32>, vector<64x32xf32>, vector<8x32xf32> -> vector<8x32xf32>
    %c0_9 = arith.constant 0 : index
    %c0_10 = arith.constant 0 : index
    %9 = vector.load %arg6[%c0_9, %c0_10] : memref<1x32xf32, #tpu.memory_space<vmem>>, vector<1x32xf32>
    %10 = vector.broadcast %9 : vector<1x32xf32> to vector<8x32xf32>
    %11 = arith.addf %8, %10 : vector<8x32xf32>
    %cst_11 = arith.constant 0.000000e+00 : f32
    %12 = vector.broadcast %cst_11 : f32 to vector<8x32xf32>
    %13 = arith.maximumf %11, %12 : vector<8x32xf32>
    %c0_12 = arith.constant 0 : index
    %c0_13 = arith.constant 0 : index
    %14 = vector.load %arg7[%c0_12, %c0_13] : memref<32x32xf32, #tpu.memory_space<vmem>>, vector<32x32xf32>
    %cst_14 = arith.constant dense<0.000000e+00> : vector<8x32xf32>
    %15 = tpu.matmul %13, %14, %cst_14 {dimension_numbers = #tpu.dot_dimension_numbers<[1], [0], [0], [1], [0, 0, 1, 1], [], []>} : vector<8x32xf32>, vector<32x32xf32>, vector<8x32xf32> -> vector<8x32xf32>
    %c0_15 = arith.constant 0 : index
    %c0_16 = arith.constant 0 : index
    %16 = vector.load %arg8[%c0_15, %c0_16] : memref<1x32xf32, #tpu.memory_space<vmem>>, vector<1x32xf32>
    %17 = vector.broadcast %16 : vector<1x32xf32> to vector<8x32xf32>
    %18 = arith.addf %15, %17 : vector<8x32xf32>
    %cst_17 = arith.constant 0.000000e+00 : f32
    %19 = vector.broadcast %cst_17 : f32 to vector<8x32xf32>
    %20 = arith.maximumf %18, %19 : vector<8x32xf32>
    %c0_18 = arith.constant 0 : index
    %c0_19 = arith.constant 0 : index
    %21 = vector.load %arg9[%c0_18, %c0_19] : memref<32x32xf32, #tpu.memory_space<vmem>>, vector<32x32xf32>
    %cst_20 = arith.constant dense<0.000000e+00> : vector<8x32xf32>
    %22 = tpu.matmul %20, %21, %cst_20 {dimension_numbers = #tpu.dot_dimension_numbers<[1], [0], [0], [1], [0, 0, 1, 1], [], []>} : vector<8x32xf32>, vector<32x32xf32>, vector<8x32xf32> -> vector<8x32xf32>
    %c0_21 = arith.constant 0 : index
    %c0_22 = arith.constant 0 : index
    %23 = vector.load %arg10[%c0_21, %c0_22] : memref<1x32xf32, #tpu.memory_space<vmem>>, vector<1x32xf32>
    %24 = vector.broadcast %23 : vector<1x32xf32> to vector<8x32xf32>
    %25 = arith.addf %22, %24 : vector<8x32xf32>
    %cst_23 = arith.constant dense<0xFF800000> : vector<8xf32>
    %26 = vector.multi_reduction <maximumf>, %25, %cst_23 [1] : vector<8x32xf32> to vector<8xf32>
    %27 = vector.shape_cast %26 : vector<8xf32> to vector<8x1xf32>
    %28 = vector.broadcast %27 : vector<8x1xf32> to vector<8x32xf32>
    %29 = arith.subf %25, %28 : vector<8x32xf32>
    %30 = math.exp %29 : vector<8x32xf32>
    %cst_24 = arith.constant dense<0.000000e+00> : vector<8xf32>
    %31 = vector.multi_reduction <add>, %30, %cst_24 [1] : vector<8x32xf32> to vector<8xf32>
    %32 = vector.shape_cast %31 : vector<8xf32> to vector<8x1xf32>
    %33 = math.log %32 : vector<8x1xf32>
    %34 = vector.broadcast %33 : vector<8x1xf32> to vector<8x32xf32>
    %35 = arith.subf %29, %34 : vector<8x32xf32>
    %c0_25 = arith.constant 0 : index
    %c0_26 = arith.constant 0 : index
    %36 = vector.load %arg11[%c0_25, %c0_26] : memref<8x32xf32, #tpu.memory_space<vmem>>, vector<8x32xf32>
    tpu.vector_store %arg11[%c0_25, %c0_26], %35 {strides = array<i32>} : memref<8x32xf32, #tpu.memory_space<vmem>>, vector<8x32xf32>,
    return
  }
  func.func @transform_0(%arg0: i32) -> (i32, i32) {
    %c0_i32 = arith.constant 0 : i32
    %c0_i32_0 = arith.constant 0 : i32
    return %arg0, %c0_i32 : i32, i32
  }
  func.func @transform_1(%arg0: i32) -> (i32, i32) {
    %c0_i32 = arith.constant 0 : i32
    %c0_i32_0 = arith.constant 0 : i32
    return %arg0, %c0_i32 : i32, i32
  }
  func.func @transform_2(%arg0: i32) -> (i32, i32) {
    %c0_i32 = arith.constant 0 : i32
    %c0_i32_0 = arith.constant 0 : i32
    return %arg0, %c0_i32 : i32, i32
  }
  func.func @transform_3(%arg0: i32) -> (i32, i32) {
    %c0_i32 = arith.constant 0 : i32
    %c0_i32_0 = arith.constant 0 : i32
    return %arg0, %c0_i32 : i32, i32
  }
  func.func @transform_4(%arg0: i32) -> (i32, i32) {
    %c0_i32 = arith.constant 0 : i32
    %c0_i32_0 = arith.constant 0 : i32
    %c0_i32_1 = arith.constant 0 : i32
    return %c0_i32, %c0_i32_0 : i32, i32
  }
  func.func @transform_5(%arg0: i32) -> (i32, i32) {
    %c0_i32 = arith.constant 0 : i32
    %c0_i32_0 = arith.constant 0 : i32
    %c0_i32_1 = arith.constant 0 : i32
    return %c0_i32, %c0_i32_0 : i32, i32
  }
  func.func @transform_6(%arg0: i32) -> (i32, i32) {
    %c0_i32 = arith.constant 0 : i32
    %c0_i32_0 = arith.constant 0 : i32
    %c0_i32_1 = arith.constant 0 : i32
    return %c0_i32, %c0_i32_0 : i32, i32
  }
  func.func @transform_7(%arg0: i32) -> (i32, i32) {
    %c0_i32 = arith.constant 0 : i32
    %c0_i32_0 = arith.constant 0 : i32
    %c0_i32_1 = arith.constant 0 : i32
    return %c0_i32, %c0_i32_0 : i32, i32
  }
  func.func @transform_8(%arg0: i32) -> (i32, i32) {
    %c0_i32 = arith.constant 0 : i32
    %c0_i32_0 = arith.constant 0 : i32
    %c0_i32_1 = arith.constant 0 : i32
    return %c0_i32, %c0_i32_0 : i32, i32
  }
  func.func @transform_9(%arg0: i32) -> (i32, i32) {
    %c0_i32 = arith.constant 0 : i32
    %c0_i32_0 = arith.constant 0 : i32
    %c0_i32_1 = arith.constant 0 : i32
    return %c0_i32, %c0_i32_0 : i32, i32
  }
  func.func @transform_10(%arg0: i32) -> (i32, i32) {
    %c0_i32 = arith.constant 0 : i32
    %c0_i32_0 = arith.constant 0 : i32
    return %arg0, %c0_i32 : i32, i32
  }
}

module attributes {stable_mosaic.version = 11 : i64} {
  func.func @_matmul_kernel(%arg0: i32, %arg1: memref<16x32xf32, #tpu.memory_space<vmem>>, %arg2: memref<32x160xf32, #tpu.memory_space<vmem>>, %arg3: memref<16x160xf32, #tpu.memory_space<vmem>>) attributes {dimension_semantics = [#tpu.dimension_semantics<parallel>], iteration_bounds = array<i64: 1>, scalar_prefetch = 0 : i64, scratch_operands = 0 : i64, tpu.core_type = #tpu.core_type<tc>, window_params = [{transform_indices = @transform_0, window_bounds = array<i64: 16, 32>}, {pipeline_mode = #tpu.pipeline_mode<synchronous>, transform_indices = @transform_1, window_bounds = array<i64: 32, 160>}, {transform_indices = @transform_2, window_bounds = array<i64: 16, 160>}]} {
    %c0 = arith.constant 0 : index
    %c0_0 = arith.constant 0 : index
    %0 = vector.load %arg1[%c0, %c0_0] : memref<16x32xf32, #tpu.memory_space<vmem>>, vector<16x32xf32>
    %c0_1 = arith.constant 0 : index
    %c0_2 = arith.constant 0 : index
    %1 = vector.load %arg2[%c0_1, %c0_2] : memref<32x160xf32, #tpu.memory_space<vmem>>, vector<32x160xf32>
    %cst = arith.constant dense<0.000000e+00> : vector<16x160xf32>
    %2 = tpu.matmul %0, %1, %cst {dimension_numbers = #tpu.dot_dimension_numbers<[1], [0], [0], [1], [0, 0, 1, 1], [], []>} : vector<16x32xf32>, vector<32x160xf32>, vector<16x160xf32> -> vector<16x160xf32>
    %c0_3 = arith.constant 0 : index
    %c0_4 = arith.constant 0 : index
    %3 = vector.load %arg3[%c0_3, %c0_4] : memref<16x160xf32, #tpu.memory_space<vmem>>, vector<16x160xf32>
    tpu.vector_store %arg3[%c0_3, %c0_4], %2 {strides = array<i32>} : memref<16x160xf32, #tpu.memory_space<vmem>>, vector<16x160xf32>,
    return
  }
  func.func @transform_0(%arg0: i32) -> (i32, i32) {
    %c0_i32 = arith.constant 0 : i32
    %c0_i32_0 = arith.constant 0 : i32
    return %arg0, %c0_i32 : i32, i32
  }
  func.func @transform_1(%arg0: i32) -> (i32, i32) {
    %c0_i32 = arith.constant 0 : i32
    %c0_i32_0 = arith.constant 0 : i32
    %c0_i32_1 = arith.constant 0 : i32
    return %c0_i32, %c0_i32_0 : i32, i32
  }
  func.func @transform_2(%arg0: i32) -> (i32, i32) {
    %c0_i32 = arith.constant 0 : i32
    %c0_i32_0 = arith.constant 0 : i32
    return %arg0, %c0_i32 : i32, i32
  }
}

module attributes {stable_mosaic.version = 11 : i64} {
  func.func @_arma_step_kernel(%arg0: i32, %arg1: memref<16x32xf32, #tpu.memory_space<vmem>>, %arg2: memref<16x32xf32, #tpu.memory_space<vmem>>, %arg3: memref<1x32xf32, #tpu.memory_space<vmem>>, %arg4: memref<32x32xf32, #tpu.memory_space<vmem>>, %arg5: memref<16x32xf32, #tpu.memory_space<vmem>>) attributes {dimension_semantics = [#tpu.dimension_semantics<parallel>], iteration_bounds = array<i64: 1>, scalar_prefetch = 0 : i64, scratch_operands = 0 : i64, tpu.core_type = #tpu.core_type<tc>, window_params = [{transform_indices = @transform_0, window_bounds = array<i64: 16, 32>}, {transform_indices = @transform_1, window_bounds = array<i64: 16, 32>}, {pipeline_mode = #tpu.pipeline_mode<synchronous>, transform_indices = @transform_2, window_bounds = array<i64: 1, 32>}, {pipeline_mode = #tpu.pipeline_mode<synchronous>, transform_indices = @transform_3, window_bounds = array<i64: 32, 32>}, {transform_indices = @transform_4, window_bounds = array<i64: 16, 32>}]} {
    %c0 = arith.constant 0 : index
    %c0_0 = arith.constant 0 : index
    %0 = vector.load %arg1[%c0, %c0_0] : memref<16x32xf32, #tpu.memory_space<vmem>>, vector<16x32xf32>
    %c0_1 = arith.constant 0 : index
    %c0_2 = arith.constant 0 : index
    %1 = vector.load %arg2[%c0_1, %c0_2] : memref<16x32xf32, #tpu.memory_space<vmem>>, vector<16x32xf32>
    %2 = arith.addf %0, %1 : vector<16x32xf32>
    %c0_3 = arith.constant 0 : index
    %c0_4 = arith.constant 0 : index
    %3 = vector.load %arg3[%c0_3, %c0_4] : memref<1x32xf32, #tpu.memory_space<vmem>>, vector<1x32xf32>
    %4 = vector.broadcast %3 : vector<1x32xf32> to vector<16x32xf32>
    %5 = arith.addf %2, %4 : vector<16x32xf32>
    %cst = arith.constant 0.000000e+00 : f32
    %6 = vector.broadcast %cst : f32 to vector<16x32xf32>
    %7 = arith.maximumf %5, %6 : vector<16x32xf32>
    %c0_5 = arith.constant 0 : index
    %c0_6 = arith.constant 0 : index
    %8 = vector.load %arg4[%c0_5, %c0_6] : memref<32x32xf32, #tpu.memory_space<vmem>>, vector<32x32xf32>
    %cst_7 = arith.constant dense<0.000000e+00> : vector<16x32xf32>
    %9 = tpu.matmul %7, %8, %cst_7 {dimension_numbers = #tpu.dot_dimension_numbers<[1], [0], [0], [1], [0, 0, 1, 1], [], []>} : vector<16x32xf32>, vector<32x32xf32>, vector<16x32xf32> -> vector<16x32xf32>
    %c0_8 = arith.constant 0 : index
    %c0_9 = arith.constant 0 : index
    %10 = vector.load %arg5[%c0_8, %c0_9] : memref<16x32xf32, #tpu.memory_space<vmem>>, vector<16x32xf32>
    tpu.vector_store %arg5[%c0_8, %c0_9], %9 {strides = array<i32>} : memref<16x32xf32, #tpu.memory_space<vmem>>, vector<16x32xf32>,
    return
  }
  func.func @transform_0(%arg0: i32) -> (i32, i32) {
    %c0_i32 = arith.constant 0 : i32
    %c0_i32_0 = arith.constant 0 : i32
    return %arg0, %c0_i32 : i32, i32
  }
  func.func @transform_1(%arg0: i32) -> (i32, i32) {
    %c0_i32 = arith.constant 0 : i32
    %c0_i32_0 = arith.constant 0 : i32
    return %arg0, %c0_i32 : i32, i32
  }
  func.func @transform_2(%arg0: i32) -> (i32, i32) {
    %c0_i32 = arith.constant 0 : i32
    %c0_i32_0 = arith.constant 0 : i32
    %c0_i32_1 = arith.constant 0 : i32
    return %c0_i32, %c0_i32_0 : i32, i32
  }
  func.func @transform_3(%arg0: i32) -> (i32, i32) {
    %c0_i32 = arith.constant 0 : i32
    %c0_i32_0 = arith.constant 0 : i32
    %c0_i32_1 = arith.constant 0 : i32
    return %c0_i32, %c0_i32_0 : i32, i32
  }
  func.func @transform_4(%arg0: i32) -> (i32, i32) {
    %c0_i32 = arith.constant 0 : i32
    %c0_i32_0 = arith.constant 0 : i32
    return %arg0, %c0_i32 : i32, i32
  }
}

module attributes {stable_mosaic.version = 11 : i64} {
  func.func @_local_head_kernel(%arg0: i32, %arg1: memref<16x32xf32, #tpu.memory_space<vmem>>, %arg2: memref<16x32xf32, #tpu.memory_space<vmem>>, %arg3: memref<1x32xf32, #tpu.memory_space<vmem>>, %arg4: memref<32x32xf32, #tpu.memory_space<vmem>>, %arg5: memref<1x32xf32, #tpu.memory_space<vmem>>, %arg6: memref<32x16xf32, #tpu.memory_space<vmem>>, %arg7: memref<1x16xf32, #tpu.memory_space<vmem>>, %arg8: memref<16x16xf32, #tpu.memory_space<vmem>>, %arg9: memref<1x16xf32, #tpu.memory_space<vmem>>, %arg10: memref<16x16xf32, #tpu.memory_space<vmem>>) attributes {dimension_semantics = [#tpu.dimension_semantics<parallel>], iteration_bounds = array<i64: 1>, scalar_prefetch = 0 : i64, scratch_operands = 0 : i64, tpu.core_type = #tpu.core_type<tc>, window_params = [{transform_indices = @transform_0, window_bounds = array<i64: 16, 32>}, {transform_indices = @transform_1, window_bounds = array<i64: 16, 32>}, {pipeline_mode = #tpu.pipeline_mode<synchronous>, transform_indices = @transform_2, window_bounds = array<i64: 1, 32>}, {pipeline_mode = #tpu.pipeline_mode<synchronous>, transform_indices = @transform_3, window_bounds = array<i64: 32, 32>}, {pipeline_mode = #tpu.pipeline_mode<synchronous>, transform_indices = @transform_4, window_bounds = array<i64: 1, 32>}, {pipeline_mode = #tpu.pipeline_mode<synchronous>, transform_indices = @transform_5, window_bounds = array<i64: 32, 16>}, {pipeline_mode = #tpu.pipeline_mode<synchronous>, transform_indices = @transform_6, window_bounds = array<i64: 1, 16>}, {pipeline_mode = #tpu.pipeline_mode<synchronous>, transform_indices = @transform_7, window_bounds = array<i64: 16, 16>}, {pipeline_mode = #tpu.pipeline_mode<synchronous>, transform_indices = @transform_8, window_bounds = array<i64: 1, 16>}, {transform_indices = @transform_9, window_bounds = array<i64: 16, 16>}]} {
    %c0 = arith.constant 0 : index
    %c0_0 = arith.constant 0 : index
    %0 = vector.load %arg1[%c0, %c0_0] : memref<16x32xf32, #tpu.memory_space<vmem>>, vector<16x32xf32>
    %c0_1 = arith.constant 0 : index
    %c0_2 = arith.constant 0 : index
    %1 = vector.load %arg2[%c0_1, %c0_2] : memref<16x32xf32, #tpu.memory_space<vmem>>, vector<16x32xf32>
    %2 = arith.addf %0, %1 : vector<16x32xf32>
    %c0_3 = arith.constant 0 : index
    %c0_4 = arith.constant 0 : index
    %3 = vector.load %arg3[%c0_3, %c0_4] : memref<1x32xf32, #tpu.memory_space<vmem>>, vector<1x32xf32>
    %4 = vector.broadcast %3 : vector<1x32xf32> to vector<16x32xf32>
    %5 = arith.addf %2, %4 : vector<16x32xf32>
    %cst = arith.constant 0.000000e+00 : f32
    %6 = vector.broadcast %cst : f32 to vector<16x32xf32>
    %7 = arith.maximumf %5, %6 : vector<16x32xf32>
    %c0_5 = arith.constant 0 : index
    %c0_6 = arith.constant 0 : index
    %8 = vector.load %arg4[%c0_5, %c0_6] : memref<32x32xf32, #tpu.memory_space<vmem>>, vector<32x32xf32>
    %cst_7 = arith.constant dense<0.000000e+00> : vector<16x32xf32>
    %9 = tpu.matmul %7, %8, %cst_7 {dimension_numbers = #tpu.dot_dimension_numbers<[1], [0], [0], [1], [0, 0, 1, 1], [], []>} : vector<16x32xf32>, vector<32x32xf32>, vector<16x32xf32> -> vector<16x32xf32>
    %c0_8 = arith.constant 0 : index
    %c0_9 = arith.constant 0 : index
    %10 = vector.load %arg5[%c0_8, %c0_9] : memref<1x32xf32, #tpu.memory_space<vmem>>, vector<1x32xf32>
    %11 = vector.broadcast %10 : vector<1x32xf32> to vector<16x32xf32>
    %12 = arith.addf %9, %11 : vector<16x32xf32>
    %cst_10 = arith.constant 0.000000e+00 : f32
    %13 = vector.broadcast %cst_10 : f32 to vector<16x32xf32>
    %14 = arith.maximumf %12, %13 : vector<16x32xf32>
    %c0_11 = arith.constant 0 : index
    %c0_12 = arith.constant 0 : index
    %15 = vector.load %arg6[%c0_11, %c0_12] : memref<32x16xf32, #tpu.memory_space<vmem>>, vector<32x16xf32>
    %cst_13 = arith.constant dense<0.000000e+00> : vector<16x16xf32>
    %16 = tpu.matmul %14, %15, %cst_13 {dimension_numbers = #tpu.dot_dimension_numbers<[1], [0], [0], [1], [0, 0, 1, 1], [], []>} : vector<16x32xf32>, vector<32x16xf32>, vector<16x16xf32> -> vector<16x16xf32>
    %c0_14 = arith.constant 0 : index
    %c0_15 = arith.constant 0 : index
    %17 = vector.load %arg7[%c0_14, %c0_15] : memref<1x16xf32, #tpu.memory_space<vmem>>, vector<1x16xf32>
    %18 = vector.broadcast %17 : vector<1x16xf32> to vector<16x16xf32>
    %19 = arith.addf %16, %18 : vector<16x16xf32>
    %cst_16 = arith.constant 0.000000e+00 : f32
    %20 = vector.broadcast %cst_16 : f32 to vector<16x16xf32>
    %21 = arith.maximumf %19, %20 : vector<16x16xf32>
    %c0_17 = arith.constant 0 : index
    %c0_18 = arith.constant 0 : index
    %22 = vector.load %arg8[%c0_17, %c0_18] : memref<16x16xf32, #tpu.memory_space<vmem>>, vector<16x16xf32>
    %cst_19 = arith.constant dense<0.000000e+00> : vector<16x16xf32>
    %23 = tpu.matmul %21, %22, %cst_19 {dimension_numbers = #tpu.dot_dimension_numbers<[1], [0], [0], [1], [0, 0, 1, 1], [], []>} : vector<16x16xf32>, vector<16x16xf32>, vector<16x16xf32> -> vector<16x16xf32>
    %c0_20 = arith.constant 0 : index
    %c0_21 = arith.constant 0 : index
    %24 = vector.load %arg9[%c0_20, %c0_21] : memref<1x16xf32, #tpu.memory_space<vmem>>, vector<1x16xf32>
    %25 = vector.broadcast %24 : vector<1x16xf32> to vector<16x16xf32>
    %26 = arith.addf %23, %25 : vector<16x16xf32>
    %27 = math.tanh %26 : vector<16x16xf32>
    %c0_22 = arith.constant 0 : index
    %c0_23 = arith.constant 0 : index
    %28 = vector.load %arg10[%c0_22, %c0_23] : memref<16x16xf32, #tpu.memory_space<vmem>>, vector<16x16xf32>
    tpu.vector_store %arg10[%c0_22, %c0_23], %27 {strides = array<i32>} : memref<16x16xf32, #tpu.memory_space<vmem>>, vector<16x16xf32>,
    return
  }
  func.func @transform_0(%arg0: i32) -> (i32, i32) {
    %c0_i32 = arith.constant 0 : i32
    %c0_i32_0 = arith.constant 0 : i32
    return %arg0, %c0_i32 : i32, i32
  }
  func.func @transform_1(%arg0: i32) -> (i32, i32) {
    %c0_i32 = arith.constant 0 : i32
    %c0_i32_0 = arith.constant 0 : i32
    return %arg0, %c0_i32 : i32, i32
  }
  func.func @transform_2(%arg0: i32) -> (i32, i32) {
    %c0_i32 = arith.constant 0 : i32
    %c0_i32_0 = arith.constant 0 : i32
    %c0_i32_1 = arith.constant 0 : i32
    return %c0_i32, %c0_i32_0 : i32, i32
  }
  func.func @transform_3(%arg0: i32) -> (i32, i32) {
    %c0_i32 = arith.constant 0 : i32
    %c0_i32_0 = arith.constant 0 : i32
    %c0_i32_1 = arith.constant 0 : i32
    return %c0_i32, %c0_i32_0 : i32, i32
  }
  func.func @transform_4(%arg0: i32) -> (i32, i32) {
    %c0_i32 = arith.constant 0 : i32
    %c0_i32_0 = arith.constant 0 : i32
    %c0_i32_1 = arith.constant 0 : i32
    return %c0_i32, %c0_i32_0 : i32, i32
  }
  func.func @transform_5(%arg0: i32) -> (i32, i32) {
    %c0_i32 = arith.constant 0 : i32
    %c0_i32_0 = arith.constant 0 : i32
    %c0_i32_1 = arith.constant 0 : i32
    return %c0_i32, %c0_i32_0 : i32, i32
  }
  func.func @transform_6(%arg0: i32) -> (i32, i32) {
    %c0_i32 = arith.constant 0 : i32
    %c0_i32_0 = arith.constant 0 : i32
    %c0_i32_1 = arith.constant 0 : i32
    return %c0_i32, %c0_i32_0 : i32, i32
  }
  func.func @transform_7(%arg0: i32) -> (i32, i32) {
    %c0_i32 = arith.constant 0 : i32
    %c0_i32_0 = arith.constant 0 : i32
    %c0_i32_1 = arith.constant 0 : i32
    return %c0_i32, %c0_i32_0 : i32, i32
  }
  func.func @transform_8(%arg0: i32) -> (i32, i32) {
    %c0_i32 = arith.constant 0 : i32
    %c0_i32_0 = arith.constant 0 : i32
    %c0_i32_1 = arith.constant 0 : i32
    return %c0_i32, %c0_i32_0 : i32, i32
  }
  func.func @transform_9(%arg0: i32) -> (i32, i32) {
    %c0_i32 = arith.constant 0 : i32
    %c0_i32_0 = arith.constant 0 : i32
    return %arg0, %c0_i32 : i32, i32
  }
}

</mosaic_0001>

<llo_original>
// kernel: gnngl_forward.15
$region0: #{gnngl_forward.15}
  #allocation0 [shape = 'u32[]', space=smem, size = 0x4, offset = 0x4, fixed_abs, tag = 'smem constant byte address 0x4 - core index']
  #allocation1 [shape = 'u32[72,128]{1,0:T(1,128)}', space=vmem, size = 0x9000, scoped, tag = 'internal scratch']
  %s0 = inlined_call_operand.vmem [shape: f32[16,64], index: 0, kind: input, shape index: {}]
  %s1 = inlined_call_operand.vmem [shape: f32[64,32], index: 1, kind: input, shape index: {}]
  %s2 = inlined_call_operand.vmem [shape: f32[1,32], index: 2, kind: input, shape index: {}]
  %s3 = inlined_call_operand.vmem [shape: f32[16,32], index: 3, kind: output, shape index: {}]
  %s4 = sld [smem:[#allocation0]]
  $region22: #{gnngl_forward.15} parent=0
    _
  %s6 = ssub.s32 1, %s4
  %s7 = scalar_select 0, %s6, %s4
  // Predicated region
  $region2: #{gnngl_forward.15} parent=0 // pred_check
    _
  $region3: #{gnngl_forward.15} parent=0 // pred_check_branch
    %9 = sbr.rel (0) target = $region5
  $region4: #{gnngl_forward.15} parent=0 // pred_region
    _
  $region5: #{gnngl_forward.15} parent=0 // pred_fallthru
    _
  // Predicated region
  $region6: #{gnngl_forward.15} parent=0 // pred_check
    _
  $region7: #{gnngl_forward.15} parent=0 // pred_check_branch
    %11 = sbr.rel (0) target = $region9
  $region8: #{gnngl_forward.15} parent=0 // pred_region
    _
  $region9: #{gnngl_forward.15} parent=0 // pred_fallthru
    _
  // Predicated region
  $region10: #{gnngl_forward.15} parent=0 // pred_check
    _
  $region11: #{gnngl_forward.15} parent=0 // pred_check_branch
    %13 = sbr.rel (0) target = $region13
  $region12: #{gnngl_forward.15} parent=0 // pred_region
    _
  $region13: #{gnngl_forward.15} parent=0 // pred_fallthru
    _
  %v14 = vld [vmem:[%s0] sm:$0xff]
  %v15 = vld [vmem:[%s0 + $0x8] sm:$0xff]
  %v16 = vld [vmem:[%s1] sm:$0xff]
  %v17 = vld [vmem:[%s1 + $0x8] sm:$0xff]
  %v18 = vld [vmem:[%s1 + $0x10] sm:$0xff]
  %v19 = vld [vmem:[%s1 + $0x18] sm:$0xff]
  %v20 = vld [vmem:[%s1 + $0x20] sm:$0xff]
  %v21 = vld [vmem:[%s1 + $0x28] sm:$0xff]
  %v22 = vld [vmem:[%s1 + $0x30] sm:$0xff]
  %v23 = vld [vmem:[%s1 + $0x38] sm:$0xff]
  %v24 = vld [vmem:[%s2] sm:$0x1]
  %v26 = vperm.slane %v24, 0
  %vm28 = vcmask 523264
  %v30 = vsel %vm28, %v14, 0
  %v33 = vsel %vm28, %v15, 0
  %35 = vmatpush.msra.mxu0 0.0
  %36 = vmatpush.msra.mxu0 0.0
  %37 = vmatpush.msra.mxu0 0.0
  %38 = vmatpush.msra.mxu0 0.0
  %39 = vmatpush.msra.mxu0 0.0
  %40 = vmatpush.msra.mxu0 0.0
  %41 = vmatpush.msra.mxu0 0.0
  %42 = vmatpush.msra.mxu0 0.0
  %43 = vmatpush.msra.mxu0 %v23
  %44 = vmatpush.msra.mxu0 %v22
  %45 = vmatpush.msra.mxu0 %v21
  %46 = vmatpush.msra.mxu0 %v20
  %47 = vmatpush.msra.mxu0 %v19
  %48 = vmatpush.msra.mxu0 %v18
  %49 = vmatpush.msra.mxu0 %v17
  %50 = vmatpush.msra.mxu0 %v16
  %51 = vmatmul.f32.gmra.mxu0 %v30
  %v52 = vpop.f32.mrf.mxu0
  %v53 = vadd.f32 %v26, %v52
  %54 = vmatmul.f32.gmra.mxu0 %v33
  %v55 = vpop.f32.mrf.mxu0
  %v56 = vadd.f32 %v26, %v55
  %57 = vdwg.mxu0
  %v58 = vmax.f32 %v53, 0.0
  %v59 = vmax.f32 %v56, 0.0
  %vm60 = vcmask 261120
  %61 = vst.msk [vmem:[%s3] sm:$0xff] %vm60, %v58
  %62 = vst.msk [vmem:[%s3 + $0x8] sm:$0xff] %vm60, %v59
  // Predicated region
  $region14: #{gnngl_forward.15} parent=0 // pred_check
    _
  $region15: #{gnngl_forward.15} parent=0 // pred_check_branch
    %64 = sbr.rel (0) target = $region17
  $region16: #{gnngl_forward.15} parent=0 // pred_region
    _
  $region17: #{gnngl_forward.15} parent=0 // pred_fallthru
    _
  // Predicated region
  $region18: #{gnngl_forward.15} parent=0 // pred_check
    _
  $region19: #{gnngl_forward.15} parent=0 // pred_check_branch
    %66 = sbr.rel (0) target = $region21
  $region20: #{gnngl_forward.15} parent=0 // pred_region
    _
  $region21: #{gnngl_forward.15} parent=0 // pred_fallthru
    _

// kernel: gnngl_forward.19
$region0: #{gnngl_forward.19}
  #allocation0 [shape = 'u32[]', space=smem, size = 0x4, offset = 0x4, fixed_abs, tag = 'smem constant byte address 0x4 - core index']
  #allocation1 [shape = 'u32[72,128]{1,0:T(1,128)}', space=vmem, size = 0x9000, scoped, tag = 'internal scratch']
  %s0 = inlined_call_operand.vmem [shape: f32[8,64], index: 0, kind: input, shape index: {}]
  %s1 = inlined_call_operand.vmem [shape: f32[8,64], index: 1, kind: input, shape index: {}]
  %s2 = inlined_call_operand.vmem [shape: f32[8,64], index: 2, kind: input, shape index: {}]
  %s3 = inlined_call_operand.vmem [shape: f32[8,64], index: 3, kind: input, shape index: {}]
  %s4 = inlined_call_operand.vmem [shape: f32[64,32], index: 4, kind: input, shape index: {}]
  %s5 = inlined_call_operand.vmem [shape: f32[1,32], index: 5, kind: input, shape index: {}]
  %s6 = inlined_call_operand.vmem [shape: f32[32,32], index: 6, kind: input, shape index: {}]
  %s7 = inlined_call_operand.vmem [shape: f32[1,32], index: 7, kind: input, shape index: {}]
  %s8 = inlined_call_operand.vmem [shape: f32[32,32], index: 8, kind: input, shape index: {}]
  %s9 = inlined_call_operand.vmem [shape: f32[1,32], index: 9, kind: input, shape index: {}]
  %s10 = inlined_call_operand.vmem [shape: f32[8,32], index: 10, kind: output, shape index: {}]
  %s11 = sld [smem:[#allocation0]]
  $region50: #{gnngl_forward.19} parent=0
    _
  %s13 = ssub.s32 1, %s11
  %s14 = scalar_select 0, %s13, %s11
  // Predicated region
  $region2: #{gnngl_forward.19} parent=0 // pred_check
    _
  $region3: #{gnngl_forward.19} parent=0 // pred_check_branch
    %16 = sbr.rel (0) target = $region5
  $region4: #{gnngl_forward.19} parent=0 // pred_region
    _
  $region5: #{gnngl_forward.19} parent=0 // pred_fallthru
    _
  // Predicated region
  $region6: #{gnngl_forward.19} parent=0 // pred_check
    _
  $region7: #{gnngl_forward.19} parent=0 // pred_check_branch
    %18 = sbr.rel (0) target = $region9
  $region8: #{gnngl_forward.19} parent=0 // pred_region
    _
  $region9: #{gnngl_forward.19} parent=0 // pred_fallthru
    _
  // Predicated region
  $region10: #{gnngl_forward.19} parent=0 // pred_check
    _
  $region11: #{gnngl_forward.19} parent=0 // pred_check_branch
    %20 = sbr.rel (0) target = $region13
  $region12: #{gnngl_forward.19} parent=0 // pred_region
    _
  $region13: #{gnngl_forward.19} parent=0 // pred_fallthru
    _
  // Predicated region
  $region14: #{gnngl_forward.19} parent=0 // pred_check
    _
  $region15: #{gnngl_forward.19} parent=0 // pred_check_branch
    %22 = sbr.rel (0) target = $region17
  $region16: #{gnngl_forward.19} parent=0 // pred_region
    _
  $region17: #{gnngl_forward.19} parent=0 // pred_fallthru
    _
  // Predicated region
  $region18: #{gnngl_forward.19} parent=0 // pred_check
    _
  $region19: #{gnngl_forward.19} parent=0 // pred_check_branch
    %24 = sbr.rel (0) target = $region21
  $region20: #{gnngl_forward.19} parent=0 // pred_region
    _
  $region21: #{gnngl_forward.19} parent=0 // pred_fallthru
    _
  // Predicated region
  $region22: #{gnngl_forward.19} parent=0 // pred_check
    _
  $region23: #{gnngl_forward.19} parent=0 // pred_check_branch
    %26 = sbr.rel (0) target = $region25
  $region24: #{gnngl_forward.19} parent=0 // pred_region
    _
  $region25: #{gnngl_forward.19} parent=0 // pred_fallthru
    _
  // Predicated region
  $region26: #{gnngl_forward.19} parent=0 // pred_check
    _
  $region27: #{gnngl_forward.19} parent=0 // pred_check_branch
    %28 = sbr.rel (0) target = $region29
  $region28: #{gnngl_forward.19} parent=0 // pred_region
    _
  $region29: #{gnngl_forward.19} parent=0 // pred_fallthru
    _
  // Predicated region
  $region30: #{gnngl_forward.19} parent=0 // pred_check
    _
  $region31: #{gnngl_forward.19} parent=0 // pred_check_branch
    %30 = sbr.rel (0) target = $region33
  $region32: #{gnngl_forward.19} parent=0 // pred_region
    _
  $region33: #{gnngl_forward.19} parent=0 // pred_fallthru
    _
  // Predicated region
  $region34: #{gnngl_forward.19} parent=0 // pred_check
    _
  $region35: #{gnngl_forward.19} parent=0 // pred_check_branch
    %32 = sbr.rel (0) target = $region37
  $region36: #{gnngl_forward.19} parent=0 // pred_region
    _
  $region37: #{gnngl_forward.19} parent=0 // pred_fallthru
    _
  // Predicated region
  $region38: #{gnngl_forward.19} parent=0 // pred_check
    _
  $region39: #{gnngl_forward.19} parent=0 // pred_check_branch
    %34 = sbr.rel (0) target = $region41
  $region40: #{gnngl_forward.19} parent=0 // pred_region
    _
  $region41: #{gnngl_forward.19} parent=0 // pred_fallthru
    _
  %v35 = vld [vmem:[%s0] sm:$0xff]
  %v36 = vld [vmem:[%s1] sm:$0xff]
  %v37 = vadd.f32 %v35, %v36
  %v38 = vld [vmem:[%s2] sm:$0xff]
  %v39 = vadd.f32 %v37, %v38
  %v40 = vld [vmem:[%s3] sm:$0xff]
  %v41 = vadd.f32 %v39, %v40
  %v42 = vld [vmem:[%s4] sm:$0xff]
  %v43 = vld [vmem:[%s4 + $0x8] sm:$0xff]
  %v44 = vld [vmem:[%s4 + $0x10] sm:$0xff]
  %v45 = vld [vmem:[%s4 + $0x18] sm:$0xff]
  %v46 = vld [vmem:[%s4 + $0x20] sm:$0xff]
  %v47 = vld [vmem:[%s4 + $0x28] sm:$0xff]
  %v48 = vld [vmem:[%s4 + $0x30] sm:$0xff]
  %v49 = vld [vmem:[%s4 + $0x38] sm:$0xff]
  %v50 = vld [vmem:[%s5] sm:$0x1]
  %v52 = vperm.slane %v50, 0
  %vm54 = vcmask 523264
  %v56 = vsel %vm54, %v41, 0
  %58 = vmatpush.msra.mxu0 0.0
  %59 = vmatpush.msra.mxu0 0.0
  %60 = vmatpush.msra.mxu0 0.0
  %61 = vmatpush.msra.mxu0 0.0
  %62 = vmatpush.msra.mxu0 0.0
  %63 = vmatpush.msra.mxu0 0.0
  %64 = vmatpush.msra.mxu0 0.0
  %65 = vmatpush.msra.mxu0 0.0
  %66 = vmatpush.msra.mxu0 %v49
  %67 = vmatpush.msra.mxu0 %v48
  %68 = vmatpush.msra.mxu0 %v47
  %69 = vmatpush.msra.mxu0 %v46
  %70 = vmatpush.msra.mxu0 %v45
  %71 = vmatpush.msra.mxu0 %v44
  %72 = vmatpush.msra.mxu0 %v43
  %73 = vmatpush.msra.mxu0 %v42
  %74 = vmatmul.f32.gmra.mxu0 %v56
  %v75 = vpop.f32.mrf.mxu0
  %v76 = vadd.f32 %v52, %v75
  %77 = vdwg.mxu0
  %v78 = vmax.f32 %v76, 0.0
  %v79 = vld [vmem:[%s6] sm:$0xff]
  %v80 = vld [vmem:[%s6 + $0x8] sm:$0xff]
  %v81 = vld [vmem:[%s6 + $0x10] sm:$0xff]
  %v82 = vld [vmem:[%s6 + $0x18] sm:$0xff]
  %v83 = vld [vmem:[%s7] sm:$0x1]
  %v85 = vperm.slane %v83, 0
  %vm87 = vcmask 261120
  %v89 = vsel %vm87, %v78, 0
  %91 = vmatpush.msra.mxu0 0.0
  %92 = vmatpush.msra.mxu0 0.0
  %93 = vmatpush.msra.mxu0 0.0
  %94 = vmatpush.msra.mxu0 0.0
  %95 = vmatpush.msra.mxu0 0.0
  %96 = vmatpush.msra.mxu0 0.0
  %97 = vmatpush.msra.mxu0 0.0
  %98 = vmatpush.msra.mxu0 0.0
  %99 = vmatpush.msra.mxu0 0.0
  %100 = vmatpush.msra.mxu0 0.0
  %101 = vmatpush.msra.mxu0 0.0
  %102 = vmatpush.msra.mxu0 0.0
  %103 = vmatpush.msra.mxu0 %v82
  %104 = vmatpush.msra.mxu0 %v81
  %105 = vmatpush.msra.mxu0 %v80
  %106 = vmatpush.msra.mxu0 %v79
  %107 = vmatmul.f32.gmra.mxu0 %v89
  %v108 = vpop.f32.mrf.mxu0
  %v109 = vadd.f32 %v85, %v108
  %110 = vdwg.mxu0
  %v111 = vmax.f32 %v109, 0.0
  %v112 = vld [vmem:[%s8] sm:$0xff]
  %v113 = vld [vmem:[%s8 + $0x8] sm:$0xff]
  %v114 = vld [vmem:[%s8 + $0x10] sm:$0xff]
  %v115 = vld [vmem:[%s8 + $0x18] sm:$0xff]
  %v116 = vld [vmem:[%s9] sm:$0x1]
  %v118 = vperm.slane %v116, 0
  %v121 = vsel %vm87, %v111, 0
  %123 = vmatpush.msra.mxu0 0.0
  %124 = vmatpush.msra.mxu0 0.0
  %125 = vmatpush.msra.mxu0 0.0
  %126 = vmatpush.msra.mxu0 0.0
  %127 = vmatpush.msra.mxu0 0.0
  %128 = vmatpush.msra.mxu0 0.0
  %129 = vmatpush.msra.mxu0 0.0
  %130 = vmatpush.msra.mxu0 0.0
  %131 = vmatpush.msra.mxu0 0.0
  %132 = vmatpush.msra.mxu0 0.0
  %133 = vmatpush.msra.mxu0 0.0
  %134 = vmatpush.msra.mxu0 0.0
  %135 = vmatpush.msra.mxu0 %v115
  %136 = vmatpush.msra.mxu0 %v114
  %137 = vmatpush.msra.mxu0 %v113
  %138 = vmatpush.msra.mxu0 %v112
  %139 = vmatmul.f32.gmra.mxu0 %v121
  %v140 = vpop.f32.mrf.mxu0
  %v141 = vadd.f32 %v118, %v140
  %142 = vdwg.mxu0
  %v143 = vsel %vm87, %v141, -inf
  %144 = vmax.xlane.f32.xlu0 %v143
  %v145 = vpop.xlane.xlu0 %144
  %v146 = vsub.f32 %v141, %v145
  %v147 = vmul.f32 %v146, 1.442695
  %v148 = vpow.pop %v147
  %v149 = vsel %vm87, %v148, 0.0
  %150 = vadd.xlane.f32.xlu0 %v149
  %v151 = vpop.xlane.xlu0 %150
  %v152 = vlog2.pop %v151
  %v153 = vmul.f32 %v152, 0.6931472
  %v154 = vsub.f32 %v146, %v153
  %155 = vst.msk [vmem:[%s10] sm:$0xff] %vm87, %v154
  // Predicated region
  $region42: #{gnngl_forward.19} parent=0 // pred_check
    _
  $region43: #{gnngl_forward.19} parent=0 // pred_check_branch
    %157 = sbr.rel (0) target = $region45
  $region44: #{gnngl_forward.19} parent=0 // pred_region
    _
  $region45: #{gnngl_forward.19} parent=0 // pred_fallthru
    _
  // Predicated region
  $region46: #{gnngl_forward.19} parent=0 // pred_check
    _
  $region47: #{gnngl_forward.19} parent=0 // pred_check_branch
    %159 = sbr.rel (0) target = $region49
  $region48: #{gnngl_forward.19} parent=0 // pred_region
    _
  $region49: #{gnngl_forward.19} parent=0 // pred_fallthru
    _

// kernel: gnngl_forward.10
$region0: #{gnngl_forward.10}
  #allocation0 [shape = 'u32[]', space=smem, size = 0x4, offset = 0x4, fixed_abs, tag = 'smem constant byte address 0x4 - core index']
  #allocation1 [shape = 'u32[72,128]{1,0:T(1,128)}', space=vmem, size = 0x9000, scoped, tag = 'internal scratch']
  %s0 = inlined_call_operand.vmem [shape: f32[16,32], index: 0, kind: input, shape index: {}]
  %s1 = inlined_call_operand.vmem [shape: f32[32,160], index: 1, kind: input, shape index: {}]
  %s2 = inlined_call_operand.vmem [shape: f32[16,160], index: 2, kind: output, shape index: {}]
  %s3 = sld [smem:[#allocation0]]
  $region18: #{gnngl_forward.10} parent=0
    _
  %s5 = ssub.s32 1, %s3
  %s6 = scalar_select 0, %s5, %s3
  // Predicated region
  $region2: #{gnngl_forward.10} parent=0 // pred_check
    _
  $region3: #{gnngl_forward.10} parent=0 // pred_check_branch
    %8 = sbr.rel (0) target = $region5
  $region4: #{gnngl_forward.10} parent=0 // pred_region
    _
  $region5: #{gnngl_forward.10} parent=0 // pred_fallthru
    _
  // Predicated region
  $region6: #{gnngl_forward.10} parent=0 // pred_check
    _
  $region7: #{gnngl_forward.10} parent=0 // pred_check_branch
    %10 = sbr.rel (0) target = $region9
  $region8: #{gnngl_forward.10} parent=0 // pred_region
    _
  $region9: #{gnngl_forward.10} parent=0 // pred_fallthru
    _
  %v11 = vld [vmem:[%s0] sm:$0xff]
  %v12 = vld [vmem:[%s0 + $0x8] sm:$0xff]
  %v13 = vld [vmem:[%s1] sm:$0xff]
  %v14 = vld [vmem:[%s1 + $0x8] sm:$0xff]
  %v15 = vld [vmem:[%s1 + $0x10] sm:$0xff]
  %v16 = vld [vmem:[%s1 + $0x18] sm:$0xff]
  %v17 = vld [vmem:[%s1 + $0x20] sm:$0xff]
  %v18 = vld [vmem:[%s1 + $0x28] sm:$0xff]
  %v19 = vld [vmem:[%s1 + $0x30] sm:$0xff]
  %v20 = vld [vmem:[%s1 + $0x38] sm:$0xff]
  %vm21 = vcmask 261120
  %v23 = vsel %vm21, %v11, 0
  %v26 = vsel %vm21, %v12, 0
  %28 = vmatpush.msra.mxu0 0.0
  %29 = vmatpush.msra.mxu0 0.0
  %30 = vmatpush.msra.mxu0 0.0
  %31 = vmatpush.msra.mxu0 0.0
  %32 = vmatpush.msra.mxu0 0.0
  %33 = vmatpush.msra.mxu0 0.0
  %34 = vmatpush.msra.mxu0 0.0
  %35 = vmatpush.msra.mxu0 0.0
  %36 = vmatpush.msra.mxu0 0.0
  %37 = vmatpush.msra.mxu0 0.0
  %38 = vmatpush.msra.mxu0 0.0
  %39 = vmatpush.msra.mxu0 0.0
  %40 = vmatpush.msra.mxu0 %v19
  %41 = vmatpush.msra.mxu0 %v17
  %42 = vmatpush.msra.mxu0 %v15
  %43 = vmatpush.msra.mxu0 %v13
  %44 = vmatmul.f32.gmra.mxu0 %v23
  %v45 = vpop.f32.mrf.mxu0
  %v46 = vadd.f32 0.0, %v45
  %47 = vmatmul.f32.gmra.mxu0 %v26
  %v48 = vpop.f32.mrf.mxu0
  %v49 = vadd.f32 0.0, %v48
  %50 = vdwg.mxu0
  %51 = vmatpush.msra.mxu0 0.0
  %52 = vmatpush.msra.mxu0 0.0
  %53 = vmatpush.msra.mxu0 0.0
  %54 = vmatpush.msra.mxu0 0.0
  %55 = vmatpush.msra.mxu0 0.0
  %56 = vmatpush.msra.mxu0 0.0
  %57 = vmatpush.msra.mxu0 0.0
  %58 = vmatpush.msra.mxu0 0.0
  %59 = vmatpush.msra.mxu0 0.0
  %60 = vmatpush.msra.mxu0 0.0
  %61 = vmatpush.msra.mxu0 0.0
  %62 = vmatpush.msra.mxu0 0.0
  %63 = vmatpush.msra.mxu0 %v20
  %64 = vmatpush.msra.mxu0 %v18
  %65 = vmatpush.msra.mxu0 %v16
  %66 = vmatpush.msra.mxu0 %v14
  %67 = vmatmul.f32.gmra.mxu0 %v23
  %v68 = vpop.f32.mrf.mxu0
  %v69 = vadd.f32 0.0, %v68
  %70 = vmatmul.f32.gmra.mxu0 %v26
  %v71 = vpop.f32.mrf.mxu0
  %v72 = vadd.f32 0.0, %v71
  %73 = vdwg.mxu0
  %74 = vst [vmem:[%s2] sm:$0xff] %v46
  %75 = vst.msk [vmem:[%s2 + $0x8] sm:$0xff] %vm21, %v69
  %76 = vst [vmem:[%s2 + $0x10] sm:$0xff] %v49
  %77 = vst.msk [vmem:[%s2 + $0x18] sm:$0xff] %vm21, %v72
  // Predicated region
  $region10: #{gnngl_forward.10} parent=0 // pred_check
    _
  $region11: #{gnngl_forward.10} parent=0 // pred_check_branch
    %79 = sbr.rel (0) target = $region13
  $region12: #{gnngl_forward.10} parent=0 // pred_region
    _
  $region13: #{gnngl_forward.10} parent=0 // pred_fallthru
    _
  // Predicated region
  $region14: #{gnngl_forward.10} parent=0 // pred_check
    _
  $region15: #{gnngl_forward.10} parent=0 // pred_check_branch
    %81 = sbr.rel (0) target = $region17
  $region16: #{gnngl_forward.10} parent=0 // pred_region
    _
  $region17: #{gnngl_forward.10} parent=0 // pred_fallthru
    _

// kernel: gnngl_forward.11
$region0: #{gnngl_forward.11}
  #allocation0 [shape = 'u32[]', space=smem, size = 0x4, offset = 0x4, fixed_abs, tag = 'smem constant byte address 0x4 - core index']
  #allocation1 [shape = 'u32[72,128]{1,0:T(1,128)}', space=vmem, size = 0x9000, scoped, tag = 'internal scratch']
  %s0 = inlined_call_operand.vmem [shape: f32[16,32], index: 0, kind: input, shape index: {}]
  %s1 = inlined_call_operand.vmem [shape: f32[16,32], index: 1, kind: input, shape index: {}]
  %s2 = inlined_call_operand.vmem [shape: f32[1,32], index: 2, kind: input, shape index: {}]
  %s3 = inlined_call_operand.vmem [shape: f32[32,32], index: 3, kind: input, shape index: {}]
  %s4 = inlined_call_operand.vmem [shape: f32[16,32], index: 4, kind: output, shape index: {}]
  %s5 = sld [smem:[#allocation0]]
  $region26: #{gnngl_forward.11} parent=0
    _
  %s7 = ssub.s32 1, %s5
  %s8 = scalar_select 0, %s7, %s5
  // Predicated region
  $region2: #{gnngl_forward.11} parent=0 // pred_check
    _
  $region3: #{gnngl_forward.11} parent=0 // pred_check_branch
    %10 = sbr.rel (0) target = $region5
  $region4: #{gnngl_forward.11} parent=0 // pred_region
    _
  $region5: #{gnngl_forward.11} parent=0 // pred_fallthru
    _
  // Predicated region
  $region6: #{gnngl_forward.11} parent=0 // pred_check
    _
  $region7: #{gnngl_forward.11} parent=0 // pred_check_branch
    %12 = sbr.rel (0) target = $region9
  $region8: #{gnngl_forward.11} parent=0 // pred_region
    _
  $region9: #{gnngl_forward.11} parent=0 // pred_fallthru
    _
  // Predicated region
  $region10: #{gnngl_forward.11} parent=0 // pred_check
    _
  $region11: #{gnngl_forward.11} parent=0 // pred_check_branch
    %14 = sbr.rel (0) target = $region13
  $region12: #{gnngl_forward.11} parent=0 // pred_region
    _
  $region13: #{gnngl_forward.11} parent=0 // pred_fallthru
    _
  // Predicated region
  $region14: #{gnngl_forward.11} parent=0 // pred_check
    _
  $region15: #{gnngl_forward.11} parent=0 // pred_check_branch
    %16 = sbr.rel (0) target = $region17
  $region16: #{gnngl_forward.11} parent=0 // pred_region
    _
  $region17: #{gnngl_forward.11} parent=0 // pred_fallthru
    _
  %v17 = vld [vmem:[%s0] sm:$0xff]
  %v18 = vld [vmem:[%s0 + $0x8] sm:$0xff]
  %v19 = vld [vmem:[%s1] sm:$0xff]
  %v20 = vld [vmem:[%s1 + $0x8] sm:$0xff]
  %v21 = vadd.f32 %v17, %v19
  %v22 = vadd.f32 %v18, %v20
  %v23 = vld [vmem:[%s2] sm:$0x1]
  %v25 = vperm.slane %v23, 0
  %v27 = vadd.f32 %v21, %v25
  %v28 = vadd.f32 %v22, %v25
  %v29 = vmax.f32 %v27, 0.0
  %v30 = vmax.f32 %v28, 0.0
  %v31 = vld [vmem:[%s3] sm:$0xff]
  %v32 = vld [vmem:[%s3 + $0x8] sm:$0xff]
  %v33 = vld [vmem:[%s3 + $0x10] sm:$0xff]
  %v34 = vld [vmem:[%s3 + $0x18] sm:$0xff]
  %vm35 = vcmask 261120
  %v37 = vsel %vm35, %v29, 0
  %v40 = vsel %vm35, %v30, 0
  %42 = vmatpush.msra.mxu0 0.0
  %43 = vmatpush.msra.mxu0 0.0
  %44 = vmatpush.msra.mxu0 0.0
  %45 = vmatpush.msra.mxu0 0.0
  %46 = vmatpush.msra.mxu0 0.0
  %47 = vmatpush.msra.mxu0 0.0
  %48 = vmatpush.msra.mxu0 0.0
  %49 = vmatpush.msra.mxu0 0.0
  %50 = vmatpush.msra.mxu0 0.0
  %51 = vmatpush.msra.mxu0 0.0
  %52 = vmatpush.msra.mxu0 0.0
  %53 = vmatpush.msra.mxu0 0.0
  %54 = vmatpush.msra.mxu0 %v34
  %55 = vmatpush.msra.mxu0 %v33
  %56 = vmatpush.msra.mxu0 %v32
  %57 = vmatpush.msra.mxu0 %v31
  %58 = vmatmul.f32.gmra.mxu0 %v37
  %v59 = vpop.f32.mrf.mxu0
  %v60 = vadd.f32 0.0, %v59
  %61 = vmatmul.f32.gmra.mxu0 %v40
  %v62 = vpop.f32.mrf.mxu0
  %v63 = vadd.f32 0.0, %v62
  %64 = vdwg.mxu0
  %65 = vst.msk [vmem:[%s4] sm:$0xff] %vm35, %v60
  %66 = vst.msk [vmem:[%s4 + $0x8] sm:$0xff] %vm35, %v63
  // Predicated region
  $region18: #{gnngl_forward.11} parent=0 // pred_check
    _
  $region19: #{gnngl_forward.11} parent=0 // pred_check_branch
    %68 = sbr.rel (0) target = $region21
  $region20: #{gnngl_forward.11} parent=0 // pred_region
    _
  $region21: #{gnngl_forward.11} parent=0 // pred_fallthru
    _
  // Predicated region
  $region22: #{gnngl_forward.11} parent=0 // pred_check
    _
  $region23: #{gnngl_forward.11} parent=0 // pred_check_branch
    %70 = sbr.rel (0) target = $region25
  $region24: #{gnngl_forward.11} parent=0 // pred_region
    _
  $region25: #{gnngl_forward.11} parent=0 // pred_fallthru
    _

// kernel: gnngl_forward.14
$region0: #{gnngl_forward.14}
  #allocation0 [shape = 'u32[]', space=smem, size = 0x4, offset = 0x4, fixed_abs, tag = 'smem constant byte address 0x4 - core index']
  #allocation1 [shape = 'u32[72,128]{1,0:T(1,128)}', space=vmem, size = 0x9000, scoped, tag = 'internal scratch']
  %s0 = inlined_call_operand.vmem [shape: f32[16,32], index: 0, kind: input, shape index: {}]
  %s1 = inlined_call_operand.vmem [shape: f32[16,32], index: 1, kind: input, shape index: {}]
  %s2 = inlined_call_operand.vmem [shape: f32[1,32], index: 2, kind: input, shape index: {}]
  %s3 = inlined_call_operand.vmem [shape: f32[32,32], index: 3, kind: input, shape index: {}]
  %s4 = inlined_call_operand.vmem [shape: f32[1,32], index: 4, kind: input, shape index: {}]
  %s5 = inlined_call_operand.vmem [shape: f32[32,16], index: 5, kind: input, shape index: {}]
  %s6 = inlined_call_operand.vmem [shape: f32[1,16], index: 6, kind: input, shape index: {}]
  %s7 = inlined_call_operand.vmem [shape: f32[16,16], index: 7, kind: input, shape index: {}]
  %s8 = inlined_call_operand.vmem [shape: f32[1,16], index: 8, kind: input, shape index: {}]
  %s9 = inlined_call_operand.hbm [shape: f32[16,16], index: 9, kind: output, shape index: {}]
  %s10 = sld [smem:[#allocation0]]
  $region46: #{gnngl_forward.14} parent=0
    _
  %s12 = ssub.s32 1, %s10
  %s13 = scalar_select 0, %s12, %s10
  $region1: #{gnngl_forward.14} parent=0
    #allocation2 [shape = 'u8[8192]{0}', space=vmem, size = 0x2000, scoped, tag = 'output window, operand 0, single buffered']
    #allocation3 [shape = 's32[1]{0}', space=sflag, size = 0x4, scoped, tag = 'scoped memory for gnngl_forward.14']
    %14 = vsyncpa [#allocation3], 0
    // Predicated region
    $region2: #{gnngl_forward.14} parent=1 // pred_check
      _
    $region3: #{gnngl_forward.14} parent=1 // pred_check_branch
      %16 = sbr.rel (0) target = $region5
    $region4: #{gnngl_forward.14} parent=1 // pred_region
      _
    $region5: #{gnngl_forward.14} parent=1 // pred_fallthru
      _
    // Predicated region
    $region6: #{gnngl_forward.14} parent=1 // pred_check
      _
    $region7: #{gnngl_forward.14} parent=1 // pred_check_branch
      %18 = sbr.rel (0) target = $region9
    $region8: #{gnngl_forward.14} parent=1 // pred_region
      _
    $region9: #{gnngl_forward.14} parent=1 // pred_fallthru
      _
    // Predicated region
    $region10: #{gnngl_forward.14} parent=1 // pred_check
      _
    $region11: #{gnngl_forward.14} parent=1 // pred_check_branch
      %20 = sbr.rel (0) target = $region13
    $region12: #{gnngl_forward.14} parent=1 // pred_region
      _
    $region13: #{gnngl_forward.14} parent=1 // pred_fallthru
      _
    // Predicated region
    $region14: #{gnngl_forward.14} parent=1 // pred_check
      _
    $region15: #{gnngl_forward.14} parent=1 // pred_check_branch
      %22 = sbr.rel (0) target = $region17
    $region16: #{gnngl_forward.14} parent=1 // pred_region
      _
    $region17: #{gnngl_forward.14} parent=1 // pred_fallthru
      _
    // Predicated region
    $region18: #{gnngl_forward.14} parent=1 // pred_check
      _
    $region19: #{gnngl_forward.14} parent=1 // pred_check_branch
      %24 = sbr.rel (0) target = $region21
    $region20: #{gnngl_forward.14} parent=1 // pred_region
      _
    $region21: #{gnngl_forward.14} parent=1 // pred_fallthru
      _
    // Predicated region
    $region22: #{gnngl_forward.14} parent=1 // pred_check
      _
    $region23: #{gnngl_forward.14} parent=1 // pred_check_branch
      %26 = sbr.rel (0) target = $region25
    $region24: #{gnngl_forward.14} parent=1 // pred_region
      _
    $region25: #{gnngl_forward.14} parent=1 // pred_fallthru
      _
    // Predicated region
    $region26: #{gnngl_forward.14} parent=1 // pred_check
      _
    $region27: #{gnngl_forward.14} parent=1 // pred_check_branch
      %28 = sbr.rel (0) target = $region29
    $region28: #{gnngl_forward.14} parent=1 // pred_region
      _
    $region29: #{gnngl_forward.14} parent=1 // pred_fallthru
      _
    // Predicated region
    $region30: #{gnngl_forward.14} parent=1 // pred_check
      _
    $region31: #{gnngl_forward.14} parent=1 // pred_check_branch
      %30 = sbr.rel (0) target = $region33
    $region32: #{gnngl_forward.14} parent=1 // pred_region
      _
    $region33: #{gnngl_forward.14} parent=1 // pred_fallthru
      _
    // Predicated region
    $region34: #{gnngl_forward.14} parent=1 // pred_check
      _
    $region35: #{gnngl_forward.14} parent=1 // pred_check_branch
      %32 = sbr.rel (0) target = $region37
    $region36: #{gnngl_forward.14} parent=1 // pred_region
      _
    $region37: #{gnngl_forward.14} parent=1 // pred_fallthru
      _
    %v33 = vld [vmem:[%s0] sm:$0xff]
    %v34 = vld [vmem:[%s0 + $0x8] sm:$0xff]
    %v35 = vld [vmem:[%s1] sm:$0xff]
    %v36 = vld [vmem:[%s1 + $0x8] sm:$0xff]
    %v37 = vadd.f32 %v33, %v35
    %v38 = vadd.f32 %v34, %v36
    %v39 = vld [vmem:[%s2] sm:$0x1]
    %v41 = vperm.slane %v39, 0
    %v43 = vadd.f32 %v37, %v41
    %v44 = vadd.f32 %v38, %v41
    %v45 = vmax.f32 %v43, 0.0
    %v46 = vmax.f32 %v44, 0.0
    %v47 = vld [vmem:[%s3] sm:$0xff]
    %v48 = vld [vmem:[%s3 + $0x8] sm:$0xff]
    %v49 = vld [vmem:[%s3 + $0x10] sm:$0xff]
    %v50 = vld [vmem:[%s3 + $0x18] sm:$0xff]
    %v51 = vld [vmem:[%s4] sm:$0x1]
    %v53 = vperm.slane %v51, 0
    %vm55 = vcmask 261120
    %v57 = vsel %vm55, %v45, 0
    %v60 = vsel %vm55, %v46, 0
    %62 = vmatpush.msra.mxu0 0.0
    %63 = vmatpush.msra.mxu0 0.0
    %64 = vmatpush.msra.mxu0 0.0
    %65 = vmatpush.msra.mxu0 0.0
    %66 = vmatpush.msra.mxu0 0.0
    %67 = vmatpush.msra.mxu0 0.0
    %68 = vmatpush.msra.mxu0 0.0
    %69 = vmatpush.msra.mxu0 0.0
    %70 = vmatpush.msra.mxu0 0.0
    %71 = vmatpush.msra.mxu0 0.0
    %72 = vmatpush.msra.mxu0 0.0
    %73 = vmatpush.msra.mxu0 0.0
    %74 = vmatpush.msra.mxu0 %v50
    %75 = vmatpush.msra.mxu0 %v49
    %76 = vmatpush.msra.mxu0 %v48
    %77 = vmatpush.msra.mxu0 %v47
    %78 = vmatmul.f32.gmra.mxu0 %v57
    %v79 = vpop.f32.mrf.mxu0
    %v80 = vadd.f32 %v53, %v79
    %81 = vmatmul.f32.gmra.mxu0 %v60
    %v82 = vpop.f32.mrf.mxu0
    %v83 = vadd.f32 %v53, %v82
    %84 = vdwg.mxu0
    %v85 = vmax.f32 %v80, 0.0
    %v86 = vmax.f32 %v83, 0.0
    %v87 = vld [vmem:[%s5] sm:$0xff]
    %v88 = vld [vmem:[%s5 + $0x8] sm:$0xff]
    %v89 = vld [vmem:[%s5 + $0x10] sm:$0xff]
    %v90 = vld [vmem:[%s5 + $0x18] sm:$0xff]
    %v91 = vld [vmem:[%s6] sm:$0x1]
    %v93 = vperm.slane %v91, 0
    %v96 = vsel %vm55, %v85, 0
    %v99 = vsel %vm55, %v86, 0
    %101 = vmatpush.msra.mxu0 0.0
    %102 = vmatpush.msra.mxu0 0.0
    %103 = vmatpush.msra.mxu0 0.0
    %104 = vmatpush.msra.mxu0 0.0
    %105 = vmatpush.msra.mxu0 0.0
    %106 = vmatpush.msra.mxu0 0.0
    %107 = vmatpush.msra.mxu0 0.0
    %108 = vmatpush.msra.mxu0 0.0
    %109 = vmatpush.msra.mxu0 0.0
    %110 = vmatpush.msra.mxu0 0.0
    %111 = vmatpush.msra.mxu0 0.0
    %112 = vmatpush.msra.mxu0 0.0
    %113 = vmatpush.msra.mxu0 %v90
    %114 = vmatpush.msra.mxu0 %v89
    %115 = vmatpush.msra.mxu0 %v88
    %116 = vmatpush.msra.mxu0 %v87
    %117 = vmatmul.f32.gmra.mxu0 %v96
    %v118 = vpop.f32.mrf.mxu0
    %v119 = vadd.f32 %v93, %v118
    %120 = vmatmul.f32.gmra.mxu0 %v99
    %v121 = vpop.f32.mrf.mxu0
    %v122 = vadd.f32 %v93, %v121
    %123 = vdwg.mxu0
    %v124 = vmax.f32 %v119, 0.0
    %v125 = vmax.f32 %v122, 0.0
    %v126 = vld [vmem:[%s7] sm:$0xff]
    %v127 = vld [vmem:[%s7 + $0x8] sm:$0xff]
    %v128 = vld [vmem:[%s8] sm:$0x1]
    %v130 = vperm.slane %v128, 0
    %vm132 = vcmask 130048
    %v134 = vsel %vm132, %v124, 0
    %v137 = vsel %vm132, %v125, 0
    %139 = vmatpush.msra.mxu0 0.0
    %140 = vmatpush.msra.mxu0 0.0
    %141 = vmatpush.msra.mxu0 0.0
    %142 = vmatpush.msra.mxu0 0.0
    %143 = vmatpush.msra.mxu0 0.0
    %144 = vmatpush.msra.mxu0 0.0
    %145 = vmatpush.msra.mxu0 0.0
    %146 = vmatpush.msra.mxu0 0.0
    %147 = vmatpush.msra.mxu0 0.0
    %148 = vmatpush.msra.mxu0 0.0
    %149 = vmatpush.msra.mxu0 0.0
    %150 = vmatpush.msra.mxu0 0.0
    %151 = vmatpush.msra.mxu0 0.0
    %152 = vmatpush.msra.mxu0 0.0
    %153 = vmatpush.msra.mxu0 %v127
    %154 = vmatpush.msra.mxu0 %v126
    %155 = vmatmul.f32.gmra.mxu0 %v134
    %v156 = vpop.f32.mrf.mxu0
    %v157 = vadd.f32 %v130, %v156
    %158 = vmatmul.f32.gmra.mxu0 %v137
    %v159 = vpop.f32.mrf.mxu0
    %v160 = vadd.f32 %v130, %v159
    %161 = vdwg.mxu0
    %v162 = vtanh.pop %v157
    %v163 = vtanh.pop %v160
    %164 = vst.msk [vmem:[#allocation2] sm:$0xff] %vm132, %v162
    %165 = vst.msk [vmem:[#allocation2 + $0x8] sm:$0xff] %vm132, %v163
    // Predicated region
    $region38: #{gnngl_forward.14} parent=1 // pred_check
      _
    $region39: #{gnngl_forward.14} parent=1 // pred_check_branch
      %167 = sbr.rel (0) target = $region41
    $region40: #{gnngl_forward.14} parent=1 // pred_region
      %169 = vsyncadd [#allocation3], 0
      %s170 = sshll.u32 [#allocation2], 4
      %s171 = int_to_ptr.vmem [resolvable:$true] %s170
      %s172 = sshll.u32 %s9, 4
      %s173 = int_to_ptr.hbm [resolvable:$true] %s172
      %178 = dma.vmem_to_hbm [thread:$0]  %s171, 256, %s173, [#allocation3], 128, 128, 8
    $region41: #{gnngl_forward.14} parent=1 // pred_fallthru
      _
    // Predicated region
    $region42: #{gnngl_forward.14} parent=1 // pred_check
      _
    $region43: #{gnngl_forward.14} parent=1 // pred_check_branch
      %180 = sbr.rel (0) target = $region45
    $region44: #{gnngl_forward.14} parent=1 // pred_region
      %182 = dma.done [#allocation3], 256
    $region45: #{gnngl_forward.14} parent=1 // pred_fallthru
      _
    %183 = vsyncpa [#allocation3], 1

</llo_original>
